<compile_context>
chip_gen: v5e
topology: v5e:2x2
jax: 0.10.0
libtpu: 0.0.40
codegen_flags: <defaults>
</compile_context>

<pallas_src>
import jax
import jax.numpy as jnp
from jax.experimental import pallas as pl
from jax.experimental.pallas import tpu as pltpu


# ----------------------------------------------------------------------------
# Kernel
# ----------------------------------------------------------------------------
def _bottle_classifier_kernel(x_ref, w1_ref, shift_ref, w2_ref, b2_ref, o_ref):
    # x arrives in f32; cast to bf16 on the VPU in-kernel (hides under the
    # MXU) instead of paying a wrapper-side HBM cast pass.
    x_bf = x_ref[...].astype(jnp.bfloat16)
    # Linear1 with eval-mode BN pre-folded into the bf16 weights; f32 accum.
    h = jnp.dot(x_bf, w1_ref[...], preferred_element_type=jnp.float32)
    # Folded (BN + bias) shift, then LeakyReLU(0.1) -- elementwise kept in f32
    # (v5e has no bf16 VPU).
    h = h + shift_ref[...]
    h = jnp.where(h >= 0, h, 0.1 * h)
    # Dropout(p=0.5) -> identity at inference.
    # Linear2: bf16 MXU operands, f32 accumulation, f32 bias add.
    out = jnp.dot(h.astype(jnp.bfloat16), w2_ref[...],
                  preferred_element_type=jnp.float32) + b2_ref[...]
    o_ref[...] = out.astype(o_ref.dtype)


# ----------------------------------------------------------------------------
# Tiling / VMEM heuristics
# ----------------------------------------------------------------------------
def _pick_bm(batch):
    """Batch tile: multiple of 8, capped at 512, aiming for >= 4 grid steps
    so each v7x TensorCore gets >= 2 tiles (per-core double-buffering of the
    x DMA) and the megacore split stays balanced."""
    if batch <= 8:
        return batch                       # single full-extent tile
    bm = min(512, max(8, batch // 4))      # >= 4 steps once batch >= 32
    bm = max(8, (bm // 8) * 8)             # (8,128) constraint on partial tiles
    return bm


def _vmem_budget_bytes(bm, in_dim, bottle_dim, out_pad):
    """Conservative scoped-VMEM budget for the pallas_call.

    Assumes every operand is double-buffered, including the grid-invariant
    weight blocks (Mosaic detects the constant block index and re-issues no
    DMA, but still allocates two buffers).  If the resident weights ever grow
    past this budget on v7x (64 MiB/TC, and BOTH cores hold their own copy
    under dimension_semantics=('parallel',)), add a grid axis over
    bottle_dim / K instead of shrinking bm.
    """
    x_buf = 2 * bm * in_dim * 4                                     # f32 x tiles
    o_buf = 2 * bm * out_pad * 4                                    # f32 out tiles
    w_buf = 2 * (in_dim * bottle_dim + bottle_dim * out_pad) * 2    # bf16 weights
    v_buf = 2 * (bottle_dim + out_pad) * 4                          # shift / bias
    h_scr = bm * bottle_dim * (4 + 2)                               # f32 h + bf16 copy
    need = x_buf + o_buf + w_buf + v_buf + h_scr
    # 50% slack for compiler temporaries; clamp into [32 MiB, 64 MiB] so the
    # same setting is valid on v7x and generous on v5e/v6e (128 MiB parts).
    return max(32 * 1024 * 1024, min(64 * 1024 * 1024, int(need * 1.5)))


# ----------------------------------------------------------------------------
# One-time (model-load) parameter preparation
# ----------------------------------------------------------------------------
def prepare_params(params, eps=1e-5):
    """Fold eval-mode BatchNorm into Linear1, lane-pad the classifier, cast
    weights to bf16.  Call ONCE at model-load time and reuse the result for
    every forward step (re-doing this per call doubles weight HBM traffic)."""
    w1, b1 = params["w1"], params["b1"]                    # (in_dim, bottle_dim)
    gamma, beta = params["bn_weight"], params["bn_bias"]
    mean, var = params["bn_running_mean"], params["bn_running_var"]
    w2, b2 = params["w2"], params["b2"]                    # (bottle_dim, out_dim)

    bottle_dim = w1.shape[1]
    out_dim = w2.shape[1]
    out_pad = ((out_dim + 127) // 128) * 128               # lane-dense output

    # Fold in f32; cast to bf16 only at the very end (keeps the BN-scale
    # rounding out of the folded weights as long as possible).
    scale = gamma.astype(jnp.float32) / jnp.sqrt(var.astype(jnp.float32) + eps)
    w1_f = (w1.astype(jnp.float32) * scale[None, :]).astype(jnp.bfloat16)
    shift = (scale * (b1 - mean) + beta).reshape(1, bottle_dim).astype(jnp.float32)

    w2_p = jnp.zeros((bottle_dim, out_pad), jnp.bfloat16)
    w2_p = w2_p.at[:, :out_dim].set(w2.astype(jnp.bfloat16))
    b2_p = jnp.zeros((1, out_pad), jnp.float32).at[:, :out_dim].set(
        b2.astype(jnp.float32))

    # NOTE: on v5e/v6e, int8 weights (with per-column scales folded here) would
    # halve weight DMA again; v7x has no MXU int path (use fp8 there instead).
    return {"w1_f": w1_f, "shift": shift, "w2_p": w2_p, "b2_p": b2_p,
            "out_dim": out_dim}


# ----------------------------------------------------------------------------
# Forward (per-step): just the pallas_call
# ----------------------------------------------------------------------------
def bottle_classifier_forward(x, prepared):
    """x: (B, in_dim) float32.  prepared: output of prepare_params()."""
    w1_f, shift = prepared["w1_f"], prepared["shift"]
    w2_p, b2_p = prepared["w2_p"], prepared["b2_p"]
    out_dim = prepared["out_dim"]

    B, in_dim = x.shape
    bottle_dim = w1_f.shape[1]
    out_pad = w2_p.shape[1]

    bm = _pick_bm(B)
    grid = (pl.cdiv(B, bm),)
    # If B % bm != 0 the last tile's out-of-range rows may contain arbitrary
    # (not necessarily zero) data; that is harmless here because every output
    # row depends only on its own input row and the excess output rows are
    # never part of the (B, out_pad) result.  Do not rely on zero padding if a
    # batch reduction is ever added.

    out_padded = pl.pallas_call(
        _bottle_classifier_kernel,
        out_shape=jax.ShapeDtypeStruct((B, out_pad), x.dtype),
        grid=grid,
        in_specs=[
            pl.BlockSpec((bm, in_dim), lambda i: (i, 0)),           # x tile (f32)
            pl.BlockSpec((in_dim, bottle_dim), lambda i: (0, 0)),   # W1' resident
            pl.BlockSpec((1, bottle_dim), lambda i: (0, 0)),        # folded shift
            pl.BlockSpec((bottle_dim, out_pad), lambda i: (0, 0)),  # W2 resident
            pl.BlockSpec((1, out_pad), lambda i: (0, 0)),           # b2
        ],
        out_specs=pl.BlockSpec((bm, out_pad), lambda i: (i, 0)),
        compiler_params=pltpu.CompilerParams(
            dimension_semantics=("parallel",),
            vmem_limit_bytes=_vmem_budget_bytes(bm, in_dim, bottle_dim, out_pad),
        ),
    )(x, w1_f, shift, w2_p, b2_p)

    # TODO(synk): for large-B serving with tiny out_dim, hand the padded
    # (B, out_pad) slab (or a bf16 version) straight to the consumer to skip
    # this extra HBM slice pass.
    return out_padded[:, :out_dim]


# ----------------------------------------------------------------------------
# Init (matches the PyTorch module's init schemes) + f32 reference
# ----------------------------------------------------------------------------
def init_params(key, in_dim, bottle_dim, out_dim):
    k1, k2, k3 = jax.random.split(key, 3)
    # bottle Linear: kaiming_normal_(mode='fan_out', a=0) on weight (out, in)
    # -> std = sqrt(2 / out_features) = sqrt(2 / bottle_dim); bias = 0
    std1 = (2.0 / bottle_dim) ** 0.5
    w1_t = jax.random.normal(k1, (bottle_dim, in_dim), jnp.float32) * std1
    # BatchNorm1d: weight ~ N(1, 0.02), bias = 0, running stats (0, 1)
    bn_w = 1.0 + 0.02 * jax.random.normal(k2, (bottle_dim,), jnp.float32)
    # classifier Linear: weight ~ N(0, 0.001), bias = 0
    w2_t = jax.random.normal(k3, (out_dim, bottle_dim), jnp.float32) * 0.001
    return {
        "w1": w1_t.T,                      # stored transposed: (in_dim, bottle_dim)
        "b1": jnp.zeros((bottle_dim,), jnp.float32),
        "bn_weight": bn_w,
        "bn_bias": jnp.zeros((bottle_dim,), jnp.float32),
        "bn_running_mean": jnp.zeros((bottle_dim,), jnp.float32),
        "bn_running_var": jnp.ones((bottle_dim,), jnp.float32),
        "w2": w2_t.T,                      # (bottle_dim, out_dim)
        "b2": jnp.zeros((out_dim,), jnp.float32),
    }


def reference_forward(x, params):
    """Pure-JAX f32 reference (eval-mode) for correctness check."""
    eps = 1e-5
    h = x @ params["w1"] + params["b1"]
    h = (h - params["bn_running_mean"]) / jnp.sqrt(params["bn_running_var"] + eps)
    h = h * params["bn_weight"] + params["bn_bias"]
    h = jnp.where(h >= 0, h, 0.1 * h)
    return h @ params["w2"] + params["b2"]


if __name__ == "__main__":
    key = jax.random.PRNGKey(0)
    kx, kp = jax.random.split(key)

    # Small demo shapes (out_dim is lane-padded to 128 inside the kernel).
    B, in_dim, bottle_dim, out_dim = 64, 128, 256, 16
    x = jax.random.normal(kx, (B, in_dim), jnp.float32)
    params = init_params(kp, in_dim, bottle_dim, out_dim)

    # One-time weight preparation (model-load time), then the per-step forward.
    prepared = prepare_params(params)
    out = bottle_classifier_forward(x, prepared)
    out = jax.block_until_ready(out)

    ref = reference_forward(x, params)
    assert out.shape == (B, out_dim), out.shape
    # bf16 MXU operands with f32 accumulation -> bf16-level tolerance.
    assert jnp.allclose(out, ref, atol=2e-3, rtol=2e-2), (
        "mismatch vs reference: max abs err = %e"
        % float(jnp.max(jnp.abs(out - ref))))

    print("KERNEL_OK")
</pallas_src>

<mosaic_0001>
module attributes {stable_mosaic.version = 11 : i64} {
  func.func @_bottle_classifier_kernel(%arg0: i32, %arg1: memref<16x128xf32, #tpu.memory_space<vmem>>, %arg2: memref<128x256xbf16, #tpu.memory_space<vmem>>, %arg3: memref<1x256xf32, #tpu.memory_space<vmem>>, %arg4: memref<256x128xbf16, #tpu.memory_space<vmem>>, %arg5: memref<1x128xf32, #tpu.memory_space<vmem>>, %arg6: memref<16x128xf32, #tpu.memory_space<vmem>>) attributes {dimension_semantics = [#tpu.dimension_semantics<parallel>], iteration_bounds = array<i64: 4>, scalar_prefetch = 0 : i64, scratch_operands = 0 : i64, tpu.core_type = #tpu.core_type<tc>, window_params = [{transform_indices = @transform_0, window_bounds = array<i64: 16, 128>}, {pipeline_mode = #tpu.pipeline_mode<synchronous>, transform_indices = @transform_1, window_bounds = array<i64: 128, 256>}, {pipeline_mode = #tpu.pipeline_mode<synchronous>, transform_indices = @transform_2, window_bounds = array<i64: 1, 256>}, {pipeline_mode = #tpu.pipeline_mode<synchronous>, transform_indices = @transform_3, window_bounds = array<i64: 256, 128>}, {pipeline_mode = #tpu.pipeline_mode<synchronous>, transform_indices = @transform_4, window_bounds = array<i64: 1, 128>}, {transform_indices = @transform_5, window_bounds = array<i64: 16, 128>}]} {
    %c0 = arith.constant 0 : index
    %c0_0 = arith.constant 0 : index
    %0 = vector.load %arg1[%c0, %c0_0] : memref<16x128xf32, #tpu.memory_space<vmem>>, vector<16x128xf32>
    %1 = arith.truncf %0 : vector<16x128xf32> to vector<16x128xbf16>
    %c0_1 = arith.constant 0 : index
    %c0_2 = arith.constant 0 : index
    %2 = vector.load %arg2[%c0_1, %c0_2] : memref<128x256xbf16, #tpu.memory_space<vmem>>, vector<128x256xbf16>
    %cst = arith.constant dense<0.000000e+00> : vector<16x256xf32>
    %3 = tpu.matmul %1, %2, %cst {dimension_numbers = #tpu.dot_dimension_numbers<[1], [0], [0], [1], [0, 0, 1, 1], [], []>} : vector<16x128xbf16>, vector<128x256xbf16>, vector<16x256xf32> -> vector<16x256xf32>
    %c0_3 = arith.constant 0 : index
    %c0_4 = arith.constant 0 : index
    %4 = vector.load %arg3[%c0_3, %c0_4] : memref<1x256xf32, #tpu.memory_space<vmem>>, vector<1x256xf32>
    %5 = vector.broadcast %4 : vector<1x256xf32> to vector<16x256xf32>
    %6 = arith.addf %3, %5 : vector<16x256xf32>
    %cst_5 = arith.constant 0.000000e+00 : f32
    %7 = vector.broadcast %cst_5 : f32 to vector<16x256xf32>
    %8 = arith.cmpf oge, %6, %7 : vector<16x256xf32>
    %cst_6 = arith.constant 1.000000e-01 : f32
    %9 = vector.broadcast %cst_6 : f32 to vector<16x256xf32>
    %10 = arith.mulf %9, %6 : vector<16x256xf32>
    %11 = arith.select %8, %6, %10 : vector<16x256xi1>, vector<16x256xf32>
    %12 = arith.truncf %11 : vector<16x256xf32> to vector<16x256xbf16>
    %c0_7 = arith.constant 0 : index
    %c0_8 = arith.constant 0 : index
    %13 = vector.load %arg4[%c0_7, %c0_8] : memref<256x128xbf16, #tpu.memory_space<vmem>>, vector<256x128xbf16>
    %cst_9 = arith.constant dense<0.000000e+00> : vector<16x128xf32>
    %14 = tpu.matmul %12, %13, %cst_9 {dimension_numbers = #tpu.dot_dimension_numbers<[1], [0], [0], [1], [0, 0, 1, 1], [], []>} : vector<16x256xbf16>, vector<256x128xbf16>, vector<16x128xf32> -> vector<16x128xf32>
    %c0_10 = arith.constant 0 : index
    %c0_11 = arith.constant 0 : index
    %15 = vector.load %arg5[%c0_10, %c0_11] : memref<1x128xf32, #tpu.memory_space<vmem>>, vector<1x128xf32>
    %16 = vector.broadcast %15 : vector<1x128xf32> to vector<16x128xf32>
    %17 = arith.addf %14, %16 : vector<16x128xf32>
    %c0_12 = arith.constant 0 : index
    %c0_13 = arith.constant 0 : index
    %18 = vector.load %arg6[%c0_12, %c0_13] : memref<16x128xf32, #tpu.memory_space<vmem>>, vector<16x128xf32>
    tpu.vector_store %arg6[%c0_12, %c0_13], %17 {strides = array<i32>} : memref<16x128xf32, #tpu.memory_space<vmem>>, vector<16x128xf32>,
    return
  }
  func.func @transform_0(%arg0: i32) -> (i32, i32) {
    %c0_i32 = arith.constant 0 : i32
    %c0_i32_0 = arith.constant 0 : i32
    return %arg0, %c0_i32 : i32, i32
  }
  func.func @transform_1(%arg0: i32) -> (i32, i32) {
    %c0_i32 = arith.constant 0 : i32
    %c0_i32_0 = arith.constant 0 : i32
    %c0_i32_1 = arith.constant 0 : i32
    return %c0_i32, %c0_i32_0 : i32, i32
  }
  func.func @transform_2(%arg0: i32) -> (i32, i32) {
    %c0_i32 = arith.constant 0 : i32
    %c0_i32_0 = arith.constant 0 : i32
    %c0_i32_1 = arith.constant 0 : i32
    return %c0_i32, %c0_i32_0 : i32, i32
  }
  func.func @transform_3(%arg0: i32) -> (i32, i32) {
    %c0_i32 = arith.constant 0 : i32
    %c0_i32_0 = arith.constant 0 : i32
    %c0_i32_1 = arith.constant 0 : i32
    return %c0_i32, %c0_i32_0 : i32, i32
  }
  func.func @transform_4(%arg0: i32) -> (i32, i32) {
    %c0_i32 = arith.constant 0 : i32
    %c0_i32_0 = arith.constant 0 : i32
    %c0_i32_1 = arith.constant 0 : i32
    return %c0_i32, %c0_i32_0 : i32, i32
  }
  func.func @transform_5(%arg0: i32) -> (i32, i32) {
    %c0_i32 = arith.constant 0 : i32
    %c0_i32_0 = arith.constant 0 : i32
    return %arg0, %c0_i32 : i32, i32
  }
}

</mosaic_0001>

<llo_original>
// kernel: tpu_custom_call.1
$region0: #{tpu_custom_call.1}
  #allocation0 [shape = 'u32[]', space=smem, size = 0x4, offset = 0x4, fixed_abs, tag = 'smem constant byte address 0x4 - core index']
  #allocation1 [shape = 'u32[72,128]{1,0:T(1,128)}', space=vmem, size = 0x9000, scoped, tag = 'internal scratch']
  %s0 = inlined_call_operand.hbm [shape: f32[64,128], index: 0, kind: input, shape index: {}]
  %s1 = inlined_call_operand.hbm [shape: bf16[128,256], index: 1, kind: input, shape index: {}]
  %s2 = inlined_call_operand.hbm [shape: f32[1,256], index: 2, kind: input, shape index: {}]
  %s3 = inlined_call_operand.hbm [shape: bf16[256,128], index: 3, kind: input, shape index: {}]
  %s4 = inlined_call_operand.vmem [shape: f32[1,128], index: 4, kind: input, shape index: {}]
  %s5 = inlined_call_operand.hbm [shape: f32[64,128], index: 5, kind: output, shape index: {}]
  %s6 = sld [smem:[#allocation0]]
  $region69: #{tpu_custom_call.1} parent=0
    _
  %s8 = ssub.s32 1, %s6
  %s9 = scalar_select 0, %s8, %s6
  $region1: #{tpu_custom_call.1} parent=0
    #allocation2 [shape = 'u8[16384]{0}', space=vmem, size = 0x4000, scoped, tag = 'input window, operand 0']
    #allocation3 [shape = 's32[2]{0}', space=sflag, size = 0x8, scoped, tag = 'scoped memory for tpu_custom_call.1']
    #allocation4 [shape = 's32[2]{0}', space=sflag, size = 0x8, scoped, tag = 'scoped memory for tpu_custom_call.1']
    #allocation5 [shape = 'u8[65536]{0}', space=vmem, size = 0x10000, scoped, tag = 'input window, operand 1, single buffered']
    #allocation6 [shape = 's32[1]{0}', space=sflag, size = 0x4, scoped, tag = 'scoped memory for tpu_custom_call.1']
    #allocation7 [shape = 'u8[1024]{0}', space=vmem, size = 0x400, scoped, tag = 'input window, operand 2, single buffered']
    #allocation8 [shape = 'u8[65536]{0}', space=vmem, size = 0x10000, scoped, tag = 'input window, operand 3, single buffered']
    #allocation9 [shape = 's32[1]{0}', space=sflag, size = 0x4, scoped, tag = 'scoped memory for tpu_custom_call.1']
    #allocation10 [shape = 'u8[16384]{0}', space=vmem, size = 0x4000, scoped, tag = 'output window, operand 0']
    %10 = vsyncpa [#allocation3], 0
    %s11 = scalar_lea.sflag [#allocation3], 1
    %12 = vsyncpa %s11, 0
    %13 = vsyncpa [#allocation6], 0
    %14 = vsyncpa [#allocation9], 0
    %15 = vsyncpa [#allocation4], 0
    %s16 = scalar_lea.sflag [#allocation4], 1
    %17 = vsyncpa %s16, 0
    loop: start=0, step=1, limit=6
    $region2: #{tpu_custom_call.1} parent=1 // loop_pre_header
      _
    $region3: #{tpu_custom_call.1} parent=1 // loop_header
      %s19 = sphi 0, %s23
      %p20 = scmp.ge.s32.totalorder %s19, 6
      %s29 = sphi 0, %s31
      %s32 = sphi 0, %s29
      %s33 = sphi 0, %s32
      %s49 = sphi 0, %s33
      %s53 = sphi 0, %s53
      %s55 = sphi 0, %s53
      %s56 = sphi 0, %s55
      %s70 = sphi 0, %s56
      %s74 = sphi 0, %s74
      %s76 = sphi 0, %s74
      %s77 = sphi 0, %s76
      %s91 = sphi 0, %s77
      %s95 = sphi 0, %s95
      %s97 = sphi 0, %s95
      %s98 = sphi 0, %s97
      %s112 = sphi 0, %s98
      %s116 = sphi 0, %s116
      %s118 = sphi 0, %s116
      %s119 = sphi 0, %s118
      %s133 = sphi 0, %s119
      %s139 = sphi 0, %s141
      %s142 = sphi 0, %s139
      %s143 = sphi 0, %s142
      %s159 = sphi 0, %s143
    $region4: #{tpu_custom_call.1} parent=1 // loop_header_branch
      %22 = sbr.rel (%p20) target = $region8
    $region5: #{tpu_custom_call.1} parent=1 // loop_body
      %s24 = ssub.s32 %s19, 1
      %s25 = ssub.s32 %s19, 2
      %s26 = sadd.s32 %s19, 1
      %s27 = ssub.s32 %s19, %s26
      %p28 = scmp.eq.s32.totalorder %s27, 0
      %s30 = sadd.s32 %s29, 1
      %s31 = scalar_select %p28, %s29, %s30
      %p34 = pneg %p28
      %p35 = scmp.eq.s32.totalorder %s19, 3
      %p36 = por %p34, %p35
      %p37 = scmp.ne.s32.totalorder %s29, %s32
      %p38 = scmp.eq.s32.totalorder %s19, 0
      %p39 = por %p37, %p38
      %p40 = scmp.ne.s32.totalorder %s29, %s32
      %p41 = scmp.eq.s32.totalorder %s24, 3
      %p42 = por %p40, %p41
      %p43 = scmp.ne.s32.totalorder %s32, %s33
      %p44 = scmp.eq.s32.totalorder %s24, 0
      %p45 = por %p43, %p44
      %p46 = scmp.ne.s32.totalorder %s32, %s33
      %p47 = scmp.eq.s32.totalorder %s25, 3
      %p48 = por %p46, %p47
      %p50 = scmp.ne.s32.totalorder %s33, %s49
      %p51 = scmp.eq.s32.totalorder %s25, 0
      %p52 = por %p50, %p51
      %s54 = sadd.s32 %s53, 1
      %p57 = scmp.eq.s32.totalorder %s19, 3
      %p58 = scmp.ne.s32.totalorder %s53, %s55
      %p59 = scmp.eq.s32.totalorder %s19, 0
      %p60 = por %p58, %p59
      %p61 = scmp.ne.s32.totalorder %s53, %s55
      %p62 = scmp.eq.s32.totalorder %s24, 3
      %p63 = por %p61, %p62
      %p64 = scmp.ne.s32.totalorder %s55, %s56
      %p65 = scmp.eq.s32.totalorder %s24, 0
      %p66 = por %p64, %p65
      %p67 = scmp.ne.s32.totalorder %s55, %s56
      %p68 = scmp.eq.s32.totalorder %s25, 3
      %p69 = por %p67, %p68
      %p71 = scmp.ne.s32.totalorder %s56, %s70
      %p72 = scmp.eq.s32.totalorder %s25, 0
      %p73 = por %p71, %p72
      %s75 = sadd.s32 %s74, 1
      %p78 = scmp.eq.s32.totalorder %s19, 3
      %p79 = scmp.ne.s32.totalorder %s74, %s76
      %p80 = scmp.eq.s32.totalorder %s19, 0
      %p81 = por %p79, %p80
      %p82 = scmp.ne.s32.totalorder %s74, %s76
      %p83 = scmp.eq.s32.totalorder %s24, 3
      %p84 = por %p82, %p83
      %p85 = scmp.ne.s32.totalorder %s76, %s77
      %p86 = scmp.eq.s32.totalorder %s24, 0
      %p87 = por %p85, %p86
      %p88 = scmp.ne.s32.totalorder %s76, %s77
      %p89 = scmp.eq.s32.totalorder %s25, 3
      %p90 = por %p88, %p89
      %p92 = scmp.ne.s32.totalorder %s77, %s91
      %p93 = scmp.eq.s32.totalorder %s25, 0
      %p94 = por %p92, %p93
      %s96 = sadd.s32 %s95, 1
      %p99 = scmp.eq.s32.totalorder %s19, 3
      %p100 = scmp.ne.s32.totalorder %s95, %s97
      %p101 = scmp.eq.s32.totalorder %s19, 0
      %p102 = por %p100, %p101
      %p103 = scmp.ne.s32.totalorder %s95, %s97
      %p104 = scmp.eq.s32.totalorder %s24, 3
      %p105 = por %p103, %p104
      %p106 = scmp.ne.s32.totalorder %s97, %s98
      %p107 = scmp.eq.s32.totalorder %s24, 0
      %p108 = por %p106, %p107
      %p109 = scmp.ne.s32.totalorder %s97, %s98
      %p110 = scmp.eq.s32.totalorder %s25, 3
      %p111 = por %p109, %p110
      %p113 = scmp.ne.s32.totalorder %s98, %s112
      %p114 = scmp.eq.s32.totalorder %s25, 0
      %p115 = por %p113, %p114
      %s117 = sadd.s32 %s116, 1
      %p120 = scmp.eq.s32.totalorder %s19, 3
      %p121 = scmp.ne.s32.totalorder %s116, %s118
      %p122 = scmp.eq.s32.totalorder %s19, 0
      %p123 = por %p121, %p122
      %p124 = scmp.ne.s32.totalorder %s116, %s118
      %p125 = scmp.eq.s32.totalorder %s24, 3
      %p126 = por %p124, %p125
      %p127 = scmp.ne.s32.totalorder %s118, %s119
      %p128 = scmp.eq.s32.totalorder %s24, 0
      %p129 = por %p127, %p128
      %p130 = scmp.ne.s32.totalorder %s118, %s119
      %p131 = scmp.eq.s32.totalorder %s25, 3
      %p132 = por %p130, %p131
      %p134 = scmp.ne.s32.totalorder %s119, %s133
      %p135 = scmp.eq.s32.totalorder %s25, 0
      %p136 = por %p134, %p135
      %s137 = ssub.s32 %s19, %s26
      %p138 = scmp.eq.s32.totalorder %s137, 0
      %s140 = sadd.s32 %s139, 1
      %s141 = scalar_select %p138, %s139, %s140
      %p144 = pneg %p138
      %p145 = scmp.eq.s32.totalorder %s19, 3
      %p146 = por %p144, %p145
      %p147 = scmp.ne.s32.totalorder %s139, %s142
      %p148 = scmp.eq.s32.totalorder %s19, 0
      %p149 = por %p147, %p148
      %p150 = scmp.ne.s32.totalorder %s139, %s142
      %p151 = scmp.eq.s32.totalorder %s24, 3
      %p152 = por %p150, %p151
      %p153 = scmp.ne.s32.totalorder %s142, %s143
      %p154 = scmp.eq.s32.totalorder %s24, 0
      %p155 = por %p153, %p154
      %p156 = scmp.ne.s32.totalorder %s142, %s143
      %p157 = scmp.eq.s32.totalorder %s25, 3
      %p158 = por %p156, %p157
      %p160 = scmp.ne.s32.totalorder %s143, %s159
      %p161 = scmp.eq.s32.totalorder %s25, 0
      %p162 = por %p160, %p161
      %p163 = scmp.le.s32.totalorder 1, %s19
      %p164 = scmp.lt.s32.totalorder %s19, 5
      %p165 = pnand %p163, %p164
      %p166 = pneg %p165
      // Predicated region
      $region9: #{tpu_custom_call.1} parent=5 // pred_check
        _
      $region10: #{tpu_custom_call.1} parent=5 // pred_check_branch
        %168 = sbr.rel (%p165) target = $region12
      $region11: #{tpu_custom_call.1} parent=5 // pred_region
        %s169 = ssub.s32 %s19, 1
        // Predicated region
        $region13: #{tpu_custom_call.1} parent=11 // pred_check
          %p170 = pneg %p66
        $region14: #{tpu_custom_call.1} parent=11 // pred_check_branch
          %172 = sbr.rel (%p170) target = $region16
        $region15: #{tpu_custom_call.1} parent=11 // pred_region
          %174 = vsyncadd [#allocation6], 0
          %s175 = sshll.u32 %s1, 4
          %s176 = int_to_ptr.hbm [resolvable:$true] %s175
          %s177 = sshll.u32 [#allocation5], 4
          %s178 = int_to_ptr.vmem [resolvable:$true] %s177
          %183 = dma.hbm_to_vmem [thread:$0]  %s176, 2048, %s178, [#allocation6], 128, 128, 8
        $region16: #{tpu_custom_call.1} parent=11 // pred_fallthru
          _
        // Predicated region
        $region17: #{tpu_custom_call.1} parent=11 // pred_check
          %p184 = pneg %p87
        $region18: #{tpu_custom_call.1} parent=11 // pred_check_branch
          %186 = sbr.rel (%p184) target = $region20
        $region19: #{tpu_custom_call.1} parent=11 // pred_region
          %188 = vsyncadd [#allocation6], 0
          %s190 = sshll.u32 %s2, 4
          %s191 = int_to_ptr.hbm [resolvable:$true] %s190
          %s192 = sshll.u32 [#allocation7], 4
          %s193 = int_to_ptr.vmem [resolvable:$true] %s192
          %195 = dma.hbm_to_vmem [thread:$0]  %s191, 32, %s193, [#allocation6]
        $region20: #{tpu_custom_call.1} parent=11 // pred_fallthru
          _
        // Predicated region
        $region21: #{tpu_custom_call.1} parent=11 // pred_check
          %p196 = pneg %p108
        $region22: #{tpu_custom_call.1} parent=11 // pred_check_branch
          %198 = sbr.rel (%p196) target = $region24
        $region23: #{tpu_custom_call.1} parent=11 // pred_region
          %200 = vsyncadd [#allocation9], 0
          %s201 = sshll.u32 %s3, 4
          %s202 = int_to_ptr.hbm [resolvable:$true] %s201
          %s203 = sshll.u32 [#allocation8], 4
          %s204 = int_to_ptr.vmem [resolvable:$true] %s203
          %209 = dma.hbm_to_vmem [thread:$0]  %s202, 2048, %s204, [#allocation9], 64, 64, 4
        $region24: #{tpu_custom_call.1} parent=11 // pred_fallthru
          _
        // Predicated region
        $region25: #{tpu_custom_call.1} parent=11 // pred_check
          %p210 = pneg %p129
        $region26: #{tpu_custom_call.1} parent=11 // pred_check_branch
          %212 = sbr.rel (%p210) target = $region28
        $region27: #{tpu_custom_call.1} parent=11 // pred_region
          _
        $region28: #{tpu_custom_call.1} parent=11 // pred_fallthru
          _
      $region12: #{tpu_custom_call.1} parent=5 // pred_fallthru
        _
      %p213 = scmp.lt.s32.totalorder %s19, 4
      // Predicated region
      $region29: #{tpu_custom_call.1} parent=5 // pred_check
        %p214 = pneg %p213
      $region30: #{tpu_custom_call.1} parent=5 // pred_check_branch
        %216 = sbr.rel (%p214) target = $region32
      $region31: #{tpu_custom_call.1} parent=5 // pred_region
        // Predicated region
        $region33: #{tpu_custom_call.1} parent=31 // pred_check
          %p217 = pneg %p39
        $region34: #{tpu_custom_call.1} parent=31 // pred_check_branch
          %219 = sbr.rel (%p217) target = $region36
        $region35: #{tpu_custom_call.1} parent=31 // pred_region
          %s220 = sand.u32 %s29, 1
          %s221 = scalar_lea.sflag [#allocation3], %s220
          %s222 = sand.u32 %s29, 1
          %s223 = smul.addr %s222, 16
          %s224 = scalar_lea.vmem [#allocation2], %s223
          %s225 = smul.u32 2, %s19
          %227 = vsyncadd %s221, 0
          %s228 = smul.addr %s225, 8
          %s229 = scalar_lea.hbm %s0, %s228
          %s230 = sshll.u32 %s229, 4
          %s231 = int_to_ptr.hbm [resolvable:$true] %s230
          %s232 = sshll.u32 %s224, 4
          %s233 = int_to_ptr.vmem [resolvable:$true] %s232
          %238 = dma.hbm_to_vmem [thread:$0]  %s231, 256, %s233, %s221, 128, 128, 8
        $region36: #{tpu_custom_call.1} parent=31 // pred_fallthru
          _
      $region32: #{tpu_custom_call.1} parent=5 // pred_fallthru
        _
      %p239 = scmp.le.s32.totalorder 1, %s19
      %p240 = scmp.lt.s32.totalorder %s19, 5
      %p241 = pnand %p239, %p240
      %p242 = pneg %p241
      // Predicated region
      $region37: #{tpu_custom_call.1} parent=5 // pred_check
        _
      $region38: #{tpu_custom_call.1} parent=5 // pred_check_branch
        %244 = sbr.rel (%p241) target = $region40
      $region39: #{tpu_custom_call.1} parent=5 // pred_region
        %s245 = ssub.s32 %s19, 1
        %s246 = sand.u32 %s32, 1
        %s247 = scalar_lea.sflag [#allocation3], %s246
        %s248 = sand.u32 %s32, 1
        %s249 = smul.addr %s248, 16
        %s250 = scalar_lea.vmem [#allocation2], %s249
        // Predicated region
        $region41: #{tpu_custom_call.1} parent=39 // pred_check
          %p251 = pneg %p45
        $region42: #{tpu_custom_call.1} parent=39 // pred_check_branch
          %253 = sbr.rel (%p251) target = $region44
        $region43: #{tpu_custom_call.1} parent=39 // pred_region
          %255 = dma.done %s247, 256
        $region44: #{tpu_custom_call.1} parent=39 // pred_fallthru
          _
        // Predicated region
        $region45: #{tpu_custom_call.1} parent=39 // pred_check
          %p256 = pneg %p66
        $region46: #{tpu_custom_call.1} parent=39 // pred_check_branch
          %258 = sbr.rel (%p256) target = $region48
        $region47: #{tpu_custom_call.1} parent=39 // pred_region
          %260 = dma.done [#allocation6], 2048
        $region48: #{tpu_custom_call.1} parent=39 // pred_fallthru
          _
        // Predicated region
        $region49: #{tpu_custom_call.1} parent=39 // pred_check
          %p261 = pneg %p87
        $region50: #{tpu_custom_call.1} parent=39 // pred_check_branch
          %263 = sbr.rel (%p261) target = $region52
        $region51: #{tpu_custom_call.1} parent=39 // pred_region
          %265 = dma.done [#allocation6], 32
        $region52: #{tpu_custom_call.1} parent=39 // pred_fallthru
          _
        // Predicated region
        $region53: #{tpu_custom_call.1} parent=39 // pred_check
          %p266 = pneg %p108
        $region54: #{tpu_custom_call.1} parent=39 // pred_check_branch
          %268 = sbr.rel (%p266) target = $region56
        $region55: #{tpu_custom_call.1} parent=39 // pred_region
          %270 = dma.done [#allocation9], 2048
        $region56: #{tpu_custom_call.1} parent=39 // pred_fallthru
          _
        %s271 = sand.u32 %s32, 1
        %s272 = scalar_lea.sflag [#allocation3], %s271
        %s273 = sand.u32 %s32, 1
        %s274 = smul.addr %s273, 16
        %s275 = scalar_lea.vmem [#allocation2], %s274
        %p276 = pneg %p45
        %p277 = pneg %p42
        %p278 = pneg %p66
        %p279 = pneg %p63
        %p280 = pneg %p87
        %p281 = pneg %p84
        %p282 = pneg %p108
        %p283 = pneg %p105
        %p284 = pneg %p129
        %p285 = pneg %p126
        %p286 = pneg %p155
        %p287 = pneg %p152
        %s288 = sand.u32 %s142, 1
        %s289 = scalar_lea.sflag [#allocation4], %s288
        %s290 = sand.u32 %s142, 1
        %s291 = smul.addr %s290, 16
        %s292 = scalar_lea.vmem [#allocation10], %s291
        %s293 = smul.u32 2, %s24
        %s294 = smul.u32 2, %s24
        %v295 = vld [vmem:[%s250] sm:$0xff]
        %v296 = vld [vmem:[%s250 + $0x8] sm:$0xff]
        %v297 = vpack.c.bf16 %v296, %v295
        %v298 = vld [vmem:[#allocation5] sm:$0xff]
        %v299 = vld [vmem:[#allocation5 + $0x8] sm:$0xff]
        %v300 = vld [vmem:[#allocation5 + $0x10] sm:$0xff]
        %v301 = vld [vmem:[#allocation5 + $0x18] sm:$0xff]
        %v302 = vld [vmem:[#allocation5 + $0x20] sm:$0xff]
        %v303 = vld [vmem:[#allocation5 + $0x28] sm:$0xff]
        %v304 = vld [vmem:[#allocation5 + $0x30] sm:$0xff]
        %v305 = vld [vmem:[#allocation5 + $0x38] sm:$0xff]
        %v306 = vld [vmem:[#allocation5 + $0x40] sm:$0xff]
        %v307 = vld [vmem:[#allocation5 + $0x48] sm:$0xff]
        %v308 = vld [vmem:[#allocation5 + $0x50] sm:$0xff]
        %v309 = vld [vmem:[#allocation5 + $0x58] sm:$0xff]
        %v310 = vld [vmem:[#allocation5 + $0x60] sm:$0xff]
        %v311 = vld [vmem:[#allocation5 + $0x68] sm:$0xff]
        %v312 = vld [vmem:[#allocation5 + $0x70] sm:$0xff]
        %v313 = vld [vmem:[#allocation5 + $0x78] sm:$0xff]
        %v314 = vld [vmem:[#allocation7] sm:$0x3]
        %v316 = vperm.slane %v314, 0
        %v317 = vperm.slane %v314, 1
        %v336 = vunpack.c.l.b16 %v298
        %v337 = vunpack.c.h.b16 %v298
        %v338 = vunpack.c.l.b16 %v299
        %v339 = vunpack.c.h.b16 %v299
        %v340 = vunpack.c.l.b16 %v300
        %v341 = vunpack.c.h.b16 %v300
        %v342 = vunpack.c.l.b16 %v301
        %v343 = vunpack.c.h.b16 %v301
        %v344 = vunpack.c.l.b16 %v302
        %v345 = vunpack.c.h.b16 %v302
        %v346 = vunpack.c.l.b16 %v303
        %v347 = vunpack.c.h.b16 %v303
        %v348 = vunpack.c.l.b16 %v304
        %v349 = vunpack.c.h.b16 %v304
        %v350 = vunpack.c.l.b16 %v305
        %v351 = vunpack.c.h.b16 %v305
        %v352 = vunpack.c.l.b16 %v306
        %v353 = vunpack.c.h.b16 %v306
        %v354 = vunpack.c.l.b16 %v307
        %v355 = vunpack.c.h.b16 %v307
        %v356 = vunpack.c.l.b16 %v308
        %v357 = vunpack.c.h.b16 %v308
        %v358 = vunpack.c.l.b16 %v309
        %v359 = vunpack.c.h.b16 %v309
        %v360 = vunpack.c.l.b16 %v310
        %v361 = vunpack.c.h.b16 %v310
        %v362 = vunpack.c.l.b16 %v311
        %v363 = vunpack.c.h.b16 %v311
        %v364 = vunpack.c.l.b16 %v312
        %v365 = vunpack.c.h.b16 %v312
        %v366 = vunpack.c.l.b16 %v313
        %v367 = vunpack.c.h.b16 %v313
        %v368 = vpack.c.b16 %v338, %v336
        %v369 = vpack.c.b16 %v339, %v337
        %v370 = vpack.c.b16 %v342, %v340
        %v371 = vpack.c.b16 %v343, %v341
        %v372 = vpack.c.b16 %v346, %v344
        %v373 = vpack.c.b16 %v347, %v345
        %v374 = vpack.c.b16 %v350, %v348
        %v375 = vpack.c.b16 %v351, %v349
        %v376 = vpack.c.b16 %v354, %v352
        %v377 = vpack.c.b16 %v355, %v353
        %v378 = vpack.c.b16 %v358, %v356
        %v379 = vpack.c.b16 %v359, %v357
        %v380 = vpack.c.b16 %v362, %v360
        %v381 = vpack.c.b16 %v363, %v361
        %v382 = vpack.c.b16 %v366, %v364
        %v383 = vpack.c.b16 %v367, %v365
        %400 = vmatpush.bf16.msra.mxu0 %v382
        %401 = vmatpush.bf16.msra.mxu0 %v380
        %402 = vmatpush.bf16.msra.mxu0 %v378
        %403 = vmatpush.bf16.msra.mxu0 %v376
        %404 = vmatpush.bf16.msra.mxu0 %v374
        %405 = vmatpush.bf16.msra.mxu0 %v372
        %406 = vmatpush.bf16.msra.mxu0 %v370
        %407 = vmatpush.bf16.msra.mxu0 %v368
        %408 = vmatmul.bf16.gmra.mxu0 %v297
        %v409 = vpop.f32.mrf.mxu0
        %v410 = vadd.f32 %v316, %v409
        %v411 = vpop.f32.mrf.mxu0
        %v412 = vadd.f32 %v316, %v411
        %413 = vdwg.mxu0
        %414 = vmatpush.bf16.msra.mxu0 %v383
        %415 = vmatpush.bf16.msra.mxu0 %v381
        %416 = vmatpush.bf16.msra.mxu0 %v379
        %417 = vmatpush.bf16.msra.mxu0 %v377
        %418 = vmatpush.bf16.msra.mxu0 %v375
        %419 = vmatpush.bf16.msra.mxu0 %v373
        %420 = vmatpush.bf16.msra.mxu0 %v371
        %421 = vmatpush.bf16.msra.mxu0 %v369
        %422 = vmatmul.bf16.gmra.mxu0 %v297
        %v423 = vpop.f32.mrf.mxu0
        %v424 = vadd.f32 %v317, %v423
        %v425 = vpop.f32.mrf.mxu0
        %v426 = vadd.f32 %v317, %v425
        %427 = vdwg.mxu0
        %vm428 = vcmp.ge.f32.partialorder %v410, 0.0
        %vm429 = vcmp.ge.f32.partialorder %v424, 0.0
        %vm430 = vcmp.ge.f32.partialorder %v412, 0.0
        %vm431 = vcmp.ge.f32.partialorder %v426, 0.0
        %v432 = vmul.f32 %v410, 0.1
        %v433 = vmul.f32 %v424, 0.1
        %v434 = vmul.f32 %v412, 0.1
        %v435 = vmul.f32 %v426, 0.1
        %v436 = vsel %vm428, %v410, %v432
        %v437 = vsel %vm429, %v424, %v433
        %v438 = vsel %vm430, %v412, %v434
        %v439 = vsel %vm431, %v426, %v435
        %v440 = vpack.c.bf16 %v438, %v436
        %v441 = vpack.c.bf16 %v439, %v437
        %v442 = vld [vmem:[#allocation8] sm:$0xf]
        %v443 = vld [vmem:[#allocation8 + $0x4] sm:$0xf]
        %v444 = vld [vmem:[#allocation8 + $0x8] sm:$0xf]
        %v445 = vld [vmem:[#allocation8 + $0xc] sm:$0xf]
        %v446 = vld [vmem:[#allocation8 + $0x10] sm:$0xf]
        %v447 = vld [vmem:[#allocation8 + $0x14] sm:$0xf]
        %v448 = vld [vmem:[#allocation8 + $0x18] sm:$0xf]
        %v449 = vld [vmem:[#allocation8 + $0x1c] sm:$0xf]
        %v450 = vld [vmem:[#allocation8 + $0x20] sm:$0xf]
        %v451 = vld [vmem:[#allocation8 + $0x24] sm:$0xf]
        %v452 = vld [vmem:[#allocation8 + $0x28] sm:$0xf]
        %v453 = vld [vmem:[#allocation8 + $0x2c] sm:$0xf]
        %v454 = vld [vmem:[#allocation8 + $0x30] sm:$0xf]
        %v455 = vld [vmem:[#allocation8 + $0x34] sm:$0xf]
        %v456 = vld [vmem:[#allocation8 + $0x38] sm:$0xf]
        %v457 = vld [vmem:[#allocation8 + $0x3c] sm:$0xf]
        %v458 = vld [vmem:[#allocation8 + $0x40] sm:$0xf]
        %v459 = vld [vmem:[#allocation8 + $0x44] sm:$0xf]
        %v460 = vld [vmem:[#allocation8 + $0x48] sm:$0xf]
        %v461 = vld [vmem:[#allocation8 + $0x4c] sm:$0xf]
        %v462 = vld [vmem:[#allocation8 + $0x50] sm:$0xf]
        %v463 = vld [vmem:[#allocation8 + $0x54] sm:$0xf]
        %v464 = vld [vmem:[#allocation8 + $0x58] sm:$0xf]
        %v465 = vld [vmem:[#allocation8 + $0x5c] sm:$0xf]
        %v466 = vld [vmem:[#allocation8 + $0x60] sm:$0xf]
        %v467 = vld [vmem:[#allocation8 + $0x64] sm:$0xf]
        %v468 = vld [vmem:[#allocation8 + $0x68] sm:$0xf]
        %v469 = vld [vmem:[#allocation8 + $0x6c] sm:$0xf]
        %v470 = vld [vmem:[#allocation8 + $0x70] sm:$0xf]
        %v471 = vld [vmem:[#allocation8 + $0x74] sm:$0xf]
        %v472 = vld [vmem:[#allocation8 + $0x78] sm:$0xf]
        %v473 = vld [vmem:[#allocation8 + $0x7c] sm:$0xf]
        %v474 = vld [vmem:[%s4] sm:$0x1]
        %v476 = vperm.slane %v474, 0
        %v510 = vunpack.c.l.b16 %v442
        %v511 = vunpack.c.l.b16 %v443
        %v512 = vunpack.c.l.b16 %v444
        %v513 = vunpack.c.l.b16 %v445
        %v514 = vunpack.c.l.b16 %v446
        %v515 = vunpack.c.l.b16 %v447
        %v516 = vunpack.c.l.b16 %v448
        %v517 = vunpack.c.l.b16 %v449
        %v518 = vunpack.c.l.b16 %v450
        %v519 = vunpack.c.l.b16 %v451
        %v520 = vunpack.c.l.b16 %v452
        %v521 = vunpack.c.l.b16 %v453
        %v522 = vunpack.c.l.b16 %v454
        %v523 = vunpack.c.l.b16 %v455
        %v524 = vunpack.c.l.b16 %v456
        %v525 = vunpack.c.l.b16 %v457
        %v526 = vunpack.c.l.b16 %v458
        %v527 = vunpack.c.l.b16 %v459
        %v528 = vunpack.c.l.b16 %v460
        %v529 = vunpack.c.l.b16 %v461
        %v530 = vunpack.c.l.b16 %v462
        %v531 = vunpack.c.l.b16 %v463
        %v532 = vunpack.c.l.b16 %v464
        %v533 = vunpack.c.l.b16 %v465
        %v534 = vunpack.c.l.b16 %v466
        %v535 = vunpack.c.l.b16 %v467
        %v536 = vunpack.c.l.b16 %v468
        %v537 = vunpack.c.l.b16 %v469
        %v538 = vunpack.c.l.b16 %v470
        %v539 = vunpack.c.l.b16 %v471
        %v540 = vunpack.c.l.b16 %v472
        %v541 = vunpack.c.l.b16 %v473
        %v542 = vpack.c.b16 %v511, %v510
        %v543 = vpack.c.b16 %v513, %v512
        %v544 = vpack.c.b16 %v515, %v514
        %v545 = vpack.c.b16 %v517, %v516
        %v546 = vpack.c.b16 %v519, %v518
        %v547 = vpack.c.b16 %v521, %v520
        %v548 = vpack.c.b16 %v523, %v522
        %v549 = vpack.c.b16 %v525, %v524
        %v550 = vpack.c.b16 %v527, %v526
        %v551 = vpack.c.b16 %v529, %v528
        %v552 = vpack.c.b16 %v531, %v530
        %v553 = vpack.c.b16 %v533, %v532
        %v554 = vpack.c.b16 %v535, %v534
        %v555 = vpack.c.b16 %v537, %v536
        %v556 = vpack.c.b16 %v539, %v538
        %v557 = vpack.c.b16 %v541, %v540
        %574 = vmatpush.bf16.msra.mxu0 %v549
        %575 = vmatpush.bf16.msra.mxu0 %v548
        %576 = vmatpush.bf16.msra.mxu0 %v547
        %577 = vmatpush.bf16.msra.mxu0 %v546
        %578 = vmatpush.bf16.msra.mxu0 %v545
        %579 = vmatpush.bf16.msra.mxu0 %v544
        %580 = vmatpush.bf16.msra.mxu0 %v543
        %581 = vmatpush.bf16.msra.mxu0 %v542
        %582 = vmatmul.bf16.gmra.mxu0 %v440
        %v583 = vpop.f32.mrf.mxu0
        %v584 = vadd.f32 %v476, %v583
        %v585 = vpop.f32.mrf.mxu0
        %v586 = vadd.f32 %v476, %v585
        %587 = vdwg.mxu0
        %588 = vmatpush.bf16.msra.mxu0 %v557
        %589 = vmatpush.bf16.msra.mxu0 %v556
        %590 = vmatpush.bf16.msra.mxu0 %v555
        %591 = vmatpush.bf16.msra.mxu0 %v554
        %592 = vmatpush.bf16.msra.mxu0 %v553
        %593 = vmatpush.bf16.msra.mxu0 %v552
        %594 = vmatpush.bf16.msra.mxu0 %v551
        %595 = vmatpush.bf16.msra.mxu0 %v550
        %596 = vmatmul.bf16.gmra.mxu0 %v441
        %v597 = vpop.f32.mrf.mxu0
        %v598 = vadd.f32 %v584, %v597
        %v599 = vpop.f32.mrf.mxu0
        %v600 = vadd.f32 %v586, %v599
        %601 = vdwg.mxu0
        %602 = vst [vmem:[%s292] sm:$0xff] %v598
        %603 = vst [vmem:[%s292 + $0x8] sm:$0xff] %v600
        %s604 = sand.u32 %s142, 1
        %s605 = scalar_lea.sflag [#allocation4], %s604
        %s606 = sand.u32 %s142, 1
        %s607 = smul.addr %s606, 16
        %s608 = scalar_lea.vmem [#allocation10], %s607
        // Predicated region
        $region57: #{tpu_custom_call.1} parent=39 // pred_check
          %p609 = pneg %p152
        $region58: #{tpu_custom_call.1} parent=39 // pred_check_branch
          %611 = sbr.rel (%p609) target = $region60
        $region59: #{tpu_custom_call.1} parent=39 // pred_region
          %s612 = smul.u32 2, %s24
          %614 = vsyncadd %s605, 0
          %s615 = smul.addr %s612, 8
          %s616 = scalar_lea.hbm %s5, %s615
          %s617 = sshll.u32 %s608, 4
          %s618 = int_to_ptr.vmem [resolvable:$true] %s617
          %s619 = sshll.u32 %s616, 4
          %s620 = int_to_ptr.hbm [resolvable:$true] %s619
          %625 = dma.vmem_to_hbm [thread:$0]  %s618, 256, %s620, %s605, 128, 128, 8
        $region60: #{tpu_custom_call.1} parent=39 // pred_fallthru
          _
      $region40: #{tpu_custom_call.1} parent=5 // pred_fallthru
        _
      %p626 = scmp.le.s32.totalorder 2, %s19
      // Predicated region
      $region61: #{tpu_custom_call.1} parent=5 // pred_check
        %p627 = pneg %p626
      $region62: #{tpu_custom_call.1} parent=5 // pred_check_branch
        %629 = sbr.rel (%p627) target = $region64
      $region63: #{tpu_custom_call.1} parent=5 // pred_region
        %s630 = ssub.s32 %s19, 2
        // Predicated region
        $region65: #{tpu_custom_call.1} parent=63 // pred_check
          %p631 = pneg %p158
        $region66: #{tpu_custom_call.1} parent=63 // pred_check_branch
          %633 = sbr.rel (%p631) target = $region68
        $region67: #{tpu_custom_call.1} parent=63 // pred_region
          %s634 = sand.u32 %s143, 1
          %s635 = scalar_lea.sflag [#allocation4], %s634
          %s636 = sand.u32 %s143, 1
          %s637 = smul.addr %s636, 16
          %s638 = scalar_lea.vmem [#allocation10], %s637
          %640 = dma.done %s635, 256
        $region68: #{tpu_custom_call.1} parent=63 // pred_fallthru
          _
      $region64: #{tpu_custom_call.1} parent=5 // pred_fallthru
        _
    $region6: #{tpu_custom_call.1} parent=1 // loop_footer
      %s23 = sadd.s32 1, %s19
    $region7: #{tpu_custom_call.1} parent=1 // loop_footer_branch
      %18 = sbr.rel target = $region3
    $region8: #{tpu_custom_call.1} parent=1 // loop_exit
      _
    %641 = vsyncpa [#allocation3], 1
    %s642 = scalar_lea.sflag [#allocation3], 1
    %643 = vsyncpa %s642, 1
    %644 = vsyncpa [#allocation6], 1
    %645 = vsyncpa [#allocation9], 1
    %646 = vsyncpa [#allocation4], 1
    %s647 = scalar_lea.sflag [#allocation4], 1
    %648 = vsyncpa %s647, 1

</llo_original>
